<compile_context>
chip_gen: v6e
topology: v6e:2x2x1
jax: 0.10.0
libtpu: 0.0.40
codegen_flags: <defaults>
</compile_context>

<pallas_src>
import math
import numpy as np
import jax
import jax.numpy as jnp
from jax import lax
from jax.experimental import pallas as pl
from jax.experimental.pallas import tpu as pltpu


# Explicit scoped-VMEM limit (>= every generation's default, < v7x physical).
_VMEM_LIMIT_BYTES = 48 * 1024 * 1024


# ----------------------------------------------------------------------------
# align_corners=True bilinear x2 interpolation matrices
# ----------------------------------------------------------------------------
def _interp_matrix_iota(n_out: int, n_in: int, *, transpose: bool,
                        dtype=jnp.float32):
    """Bilinear (align_corners=True) interpolation matrix built from iotas.

    Returns (n_out, n_in), or (n_in, n_out) if transpose=True.  Usable inside
    a Pallas kernel: only broadcasted_iota / elementwise ops, no array
    constants and no extra DMA stream.
    """
    shape = (n_in, n_out) if transpose else (n_out, n_in)
    out_ax = 1 if transpose else 0
    in_ax = 0 if transpose else 1
    if n_in == 1:
        return jnp.ones(shape, dtype)
    scale = (n_in - 1) / (n_out - 1)
    src = lax.broadcasted_iota(jnp.float32, shape, out_ax) * scale
    idx = lax.broadcasted_iota(jnp.float32, shape, in_ax)
    w = jnp.maximum(1.0 - jnp.abs(src - idx), 0.0)
    return w.astype(dtype)


def _interp_matrix_np(n_out: int, n_in: int) -> np.ndarray:
    """Reference (numpy) version of the same matrix, for the f32 reference."""
    if n_in == 1:
        return np.ones((n_out, n_in), np.float32)
    out = np.zeros((n_out, n_in), np.float32)
    for j in range(n_out):
        src = j * (n_in - 1) / (n_out - 1)
        i0 = min(int(math.floor(src)), n_in - 1)
        i1 = min(i0 + 1, n_in - 1)
        f = src - i0
        out[j, i0] += 1.0 - f
        out[j, i1] += f
    return out


def _pick_cb(cout: int, cap: int = 256) -> int:
    """Largest output-channel block <= cap dividing cout (multiple of 8 when
    possible; 256 fills the v6e/v7x MXU, falls back to cout for tiny stages)."""
    for cb in (256, 128, 64, 32, 16, 8):
        if cb <= cap and cb <= cout and cout % cb == 0:
            return cb
    return cout


# ----------------------------------------------------------------------------
# Kernel 1: 1x1 conv as a single flat-spatial MXU dot
# ----------------------------------------------------------------------------
def _conv1x1_kernel(x_ref, w_ref, b_ref, o_ref):
    # x_ref: (1, Cin, S)   w_ref: (Cb, Cin)   b_ref: (Cb, 1)   o_ref: (1, Cb, S)
    x = x_ref[0].astype(jnp.bfloat16)            # (Cin, S)
    w = w_ref[...].astype(jnp.bfloat16)          # (Cb, Cin)
    y = jnp.dot(w, x, preferred_element_type=jnp.float32)   # one dot, N = H*W
    y = y + b_ref[...]                           # (Cb, S) f32
    o_ref[0] = y.astype(o_ref.dtype)


def _conv1x1(x_flat, weight, bias, out_dtype):
    """x_flat: (B, Cin, S) -> (B, Cout, S)."""
    B, Cin, S = x_flat.shape
    Cout = weight.shape[0]
    cb = _pick_cb(Cout)
    wt = weight.reshape(Cout, Cin).astype(jnp.bfloat16)
    b2 = bias.reshape(Cout, 1).astype(jnp.float32)
    return pl.pallas_call(
        _conv1x1_kernel,
        out_shape=jax.ShapeDtypeStruct((B, Cout, S), out_dtype),
        grid=(B, Cout // cb),
        in_specs=[
            pl.BlockSpec((1, Cin, S), lambda b, c: (b, 0, 0)),
            pl.BlockSpec((cb, Cin), lambda b, c: (c, 0)),
            pl.BlockSpec((cb, 1), lambda b, c: (c, 0)),
        ],
        out_specs=pl.BlockSpec((1, cb, S), lambda b, c: (b, c, 0)),
        compiler_params=pltpu.CompilerParams(
            dimension_semantics=("parallel", "parallel"),
            vmem_limit_bytes=_VMEM_LIMIT_BYTES),
    )(x_flat, wt, b2)


# ----------------------------------------------------------------------------
# Kernel 2: separable bilinear x2 upsample (MXU) + skip add, one block store
# ----------------------------------------------------------------------------
def _make_upsample_kernel(H: int, W: int):
    H2, W2 = 2 * H, 2 * W

    def kernel(y_ref, skip_ref, o_ref):
        # y_ref: (1, Cb, H, W)   skip_ref / o_ref: (1, Cb, H2, W2)
        y = y_ref[0].astype(jnp.bfloat16)                     # (Cb, H, W)
        cb = y.shape[0]

        # Interpolation operators, built from iotas; bf16 MXU operands.
        rw_t = _interp_matrix_iota(W2, W, transpose=True, dtype=jnp.bfloat16)
        rh = _interp_matrix_iota(H2, H, transpose=False, dtype=jnp.bfloat16)
        rw_b = jnp.broadcast_to(rw_t[None], (cb, W, W2))
        rh_b = jnp.broadcast_to(rh[None], (cb, H2, H))

        # W direction: (Cb, H, W) @ (W, W2) batched over channels.
        t = jnp.einsum("chw,cwk->chk", y, rw_b,
                       preferred_element_type=jnp.float32)    # (Cb, H, W2)
        # H direction: (H2, H) @ (Cb, H, W2) batched over channels.
        z = jnp.einsum("cJh,chk->cJk", rh_b, t.astype(jnp.bfloat16),
                       preferred_element_type=jnp.float32)    # (Cb, H2, W2)

        # Skip at native dtype, f32 add, single full-block store.
        o_ref[0] = (z + skip_ref[0].astype(jnp.float32)).astype(o_ref.dtype)

    return kernel


def _upsample2x_add(y, skip, out_dtype):
    """y: (B, Cout, H, W);  skip: (B, Cout, 2H, 2W)  ->  (B, Cout, 2H, 2W)."""
    B, Cout, H, W = y.shape
    H2, W2 = 2 * H, 2 * W
    assert skip.shape == (B, Cout, H2, W2)
    cb = _pick_cb(Cout)
    return pl.pallas_call(
        _make_upsample_kernel(H, W),
        out_shape=jax.ShapeDtypeStruct((B, Cout, H2, W2), out_dtype),
        grid=(B, Cout // cb),
        in_specs=[
            pl.BlockSpec((1, cb, H, W), lambda b, c: (b, c, 0, 0)),
            pl.BlockSpec((1, cb, H2, W2), lambda b, c: (b, c, 0, 0)),
        ],
        out_specs=pl.BlockSpec((1, cb, H2, W2), lambda b, c: (b, c, 0, 0)),
        compiler_params=pltpu.CompilerParams(
            dimension_semantics=("parallel", "parallel"),
            vmem_limit_bytes=_VMEM_LIMIT_BYTES),
    )(y, skip)


# ----------------------------------------------------------------------------
# Decoder forward
# ----------------------------------------------------------------------------
def _decoder_stage(x, weight, bias, skip, *, final_stage):
    """x: (B, Cin, H, W);  skip: (B, Cout, 2H, 2W)  ->  (B, Cout, 2H, 2W)."""
    B, Cin, H, W = x.shape
    Cout = weight.shape[0]
    # Flat-spatial view for the conv is a free (contiguous) HBM reshape.
    y_flat = _conv1x1(x.reshape(B, Cin, H * W), weight, bias, jnp.bfloat16)
    y = y_flat.reshape(B, Cout, H, W)            # free reshape, DMA'd as 4-D
    out_dtype = jnp.float32 if final_stage else jnp.bfloat16
    return _upsample2x_add(y, skip, out_dtype)


def decoder_forward(feature_list, weights, biases):
    """Pallas implementation of Decoder.forward (NCHW in / NCHW out)."""
    main = feature_list[-1]
    for i in range(len(feature_list) - 2, -1, -1):
        main = _decoder_stage(main, weights[i], biases[i], feature_list[i],
                              final_stage=(i == 0))
    return main


# ----------------------------------------------------------------------------
# Pure-JAX f32 reference (same semantics) for the correctness check.
# ----------------------------------------------------------------------------
def _reference_stage(x_nchw, weight, bias, skip_nchw):
    B, Cin, H, W = x_nchw.shape
    Cout = weight.shape[0]
    H2, W2 = 2 * H, 2 * W
    y = jnp.einsum("bchw,oc->bohw", x_nchw, weight.reshape(Cout, Cin))
    y = y + bias.reshape(1, Cout, 1, 1)
    rh = jnp.asarray(_interp_matrix_np(H2, H))
    rw = jnp.asarray(_interp_matrix_np(W2, W))
    z = jnp.einsum("Hh,bchw,Ww->bcHW", rh, y, rw)
    return z + skip_nchw


def decoder_reference(feature_list, weights, biases):
    main = feature_list[-1]
    for i in range(len(feature_list) - 2, -1, -1):
        main = _reference_stage(main, weights[i], biases[i], feature_list[i])
    return main


if __name__ == "__main__":
    key = jax.random.PRNGKey(0)

    B, C, H, W = 2, 4, 16, 16
    depth = 4

    # Feature pyramid: feature_list[i] has C*2^i channels, spatial /2^i.
    feats = []
    for i in range(depth):
        key, sub = jax.random.split(key)
        feats.append(jax.random.normal(
            sub, (B, C * 2 ** i, H // 2 ** i, W // 2 ** i), jnp.float32))

    # Deterministic parameter init for align[i]: Conv2d(C*2^(i+1), C*2^i, 1).
    weights, biases = [], []
    for i in range(depth - 1):
        cin, cout = C * 2 ** (i + 1), C * 2 ** i
        key, kw, kb = jax.random.split(key, 3)
        bound = 1.0 / np.sqrt(cin)
        weights.append(jax.random.uniform(
            kw, (cout, cin, 1, 1), jnp.float32, -bound, bound))
        biases.append(jax.random.uniform(
            kb, (cout,), jnp.float32, -bound, bound))

    out = jax.block_until_ready(decoder_forward(feats, weights, biases))
    assert out.shape == (B, C, H, W), out.shape

    ref = jax.block_until_ready(decoder_reference(feats, weights, biases))
    # Tolerance sized for bf16 matmul operands / bf16 intermediate stage
    # outputs over 3 chained stages (skip adds stay f32); a layout/indexing
    # bug would produce O(1) mismatches.
    np.testing.assert_allclose(np.asarray(out), np.asarray(ref),
                               rtol=3e-2, atol=3e-2)

    print("KERNEL_OK")
</pallas_src>

<mosaic_0001>
module attributes {stable_mosaic.version = 11 : i64} {
  func.func @_conv1x1_kernel(%arg0: i32, %arg1: i32, %arg2: memref<1x32x4xf32, #tpu.memory_space<vmem>>, %arg3: memref<16x32xbf16, #tpu.memory_space<vmem>>, %arg4: memref<16x1xf32, #tpu.memory_space<vmem>>, %arg5: memref<1x16x4xbf16, #tpu.memory_space<vmem>>) attributes {dimension_semantics = [#tpu.dimension_semantics<parallel>, #tpu.dimension_semantics<parallel>], iteration_bounds = array<i64: 2, 1>, scalar_prefetch = 0 : i64, scratch_operands = 0 : i64, tpu.core_type = #tpu.core_type<tc>, window_params = [{transform_indices = @transform_0, window_bounds = array<i64: 1, 32, 4>}, {transform_indices = @transform_1, window_bounds = array<i64: 16, 32>}, {transform_indices = @transform_2, window_bounds = array<i64: 16, 1>}, {transform_indices = @transform_3, window_bounds = array<i64: 1, 16, 4>}]} {
    %c0 = arith.constant 0 : index
    %c0_0 = arith.constant 0 : index
    %c0_1 = arith.constant 0 : index
    %0 = vector.load %arg2[%c0, %c0_0, %c0_1] : memref<1x32x4xf32, #tpu.memory_space<vmem>>, vector<1x32x4xf32>
    %1 = vector.shape_cast %0 : vector<1x32x4xf32> to vector<32x4xf32>
    %2 = arith.truncf %1 : vector<32x4xf32> to vector<32x4xbf16>
    %c0_2 = arith.constant 0 : index
    %c0_3 = arith.constant 0 : index
    %3 = vector.load %arg3[%c0_2, %c0_3] : memref<16x32xbf16, #tpu.memory_space<vmem>>, vector<16x32xbf16>
    %cst = arith.constant dense<0.000000e+00> : vector<16x4xf32>
    %4 = tpu.matmul %3, %2, %cst {dimension_numbers = #tpu.dot_dimension_numbers<[1], [0], [0], [1], [0, 0, 1, 1], [], []>} : vector<16x32xbf16>, vector<32x4xbf16>, vector<16x4xf32> -> vector<16x4xf32>
    %c0_4 = arith.constant 0 : index
    %c0_5 = arith.constant 0 : index
    %5 = vector.load %arg4[%c0_4, %c0_5] : memref<16x1xf32, #tpu.memory_space<vmem>>, vector<16x1xf32>
    %6 = vector.broadcast %5 : vector<16x1xf32> to vector<16x4xf32>
    %7 = arith.addf %4, %6 : vector<16x4xf32>
    %8 = arith.truncf %7 : vector<16x4xf32> to vector<16x4xbf16>
    %c0_6 = arith.constant 0 : index
    %c0_7 = arith.constant 0 : index
    %c0_8 = arith.constant 0 : index
    %9 = vector.load %arg5[%c0_6, %c0_7, %c0_8] : memref<1x16x4xbf16, #tpu.memory_space<vmem>>, vector<1x16x4xbf16>
    %10 = vector.shape_cast %9 : vector<1x16x4xbf16> to vector<16x4xbf16>
    %11 = vector.shape_cast %8 : vector<16x4xbf16> to vector<1x16x4xbf16>
    tpu.vector_store %arg5[%c0_6, %c0_7, %c0_8], %11 {strides = array<i32>} : memref<1x16x4xbf16, #tpu.memory_space<vmem>>, vector<1x16x4xbf16>,
    return
  }
  func.func @transform_0(%arg0: i32, %arg1: i32) -> (i32, i32, i32) {
    %c0_i32 = arith.constant 0 : i32
    %c0_i32_0 = arith.constant 0 : i32
    %c0_i32_1 = arith.constant 0 : i32
    return %arg0, %c0_i32, %c0_i32_0 : i32, i32, i32
  }
  func.func @transform_1(%arg0: i32, %arg1: i32) -> (i32, i32) {
    %c0_i32 = arith.constant 0 : i32
    %c0_i32_0 = arith.constant 0 : i32
    return %arg1, %c0_i32 : i32, i32
  }
  func.func @transform_2(%arg0: i32, %arg1: i32) -> (i32, i32) {
    %c0_i32 = arith.constant 0 : i32
    %c0_i32_0 = arith.constant 0 : i32
    return %arg1, %c0_i32 : i32, i32
  }
  func.func @transform_3(%arg0: i32, %arg1: i32) -> (i32, i32, i32) {
    %c0_i32 = arith.constant 0 : i32
    %c0_i32_0 = arith.constant 0 : i32
    return %arg0, %arg1, %c0_i32 : i32, i32, i32
  }
}

</mosaic_0001>

<llo_original>
// kernel: tpu_custom_call.1
$region0: #{tpu_custom_call.1}
  #allocation0 [shape = 'u32[]', space=smem, size = 0x4, offset = 0x4, fixed_abs, tag = 'smem constant byte address 0x4 - core index']
  #allocation1 [shape = 'u32[144,128]{1,0:T(1,128)}', space=vmem, size = 0x12000, scoped, tag = 'internal scratch']
  %s0 = inlined_call_operand.vmem [shape: f32[2,32,4], index: 0, kind: input, shape index: {}]
  %s1 = inlined_call_operand.vmem [shape: bf16[16,32], index: 1, kind: input, shape index: {}]
  %s2 = inlined_call_operand.vmem [shape: f32[16,1], index: 2, kind: input, shape index: {}]
  %s3 = inlined_call_operand.vmem [shape: bf16[2,16,4], index: 3, kind: output, shape index: {}]
  %s4 = sld [smem:[#allocation0]]
  $region45: #{tpu_custom_call.1} parent=0
    _
  %s6 = ssub.s32 1, %s4
  %s7 = scalar_select 0, %s6, %s4
  loop: start=0, step=1, limit=4
  $region2: #{tpu_custom_call.1} parent=0 // loop_pre_header
    _
  $region3: #{tpu_custom_call.1} parent=0 // loop_header
    %s9 = sphi 0, %s13
    %p10 = scmp.ge.s32.totalorder %s9, 4
    %s16 = sphi 0, %s28
    %s17 = sphi 0, %s24
    %s18 = sphi 0, %s16
    %s19 = sphi 0, %s17
    %s20 = sphi 0, %s18
    %s21 = sphi 0, %s19
    %s31 = sphi 0, %s33
    %s34 = sphi 0, %s31
    %s35 = sphi 0, %s34
    %s51 = sphi 0, %s35
    %s57 = sphi 0, %s59
    %s60 = sphi 0, %s57
    %s61 = sphi 0, %s60
    %s77 = sphi 0, %s61
    %s83 = sphi 0, %s85
    %s86 = sphi 0, %s83
    %s87 = sphi 0, %s86
    %s103 = sphi 0, %s87
    %s111 = sphi 0, %s113
    %s114 = sphi 0, %s111
    %s115 = sphi 0, %s114
    %s131 = sphi 0, %s115
  $region4: #{tpu_custom_call.1} parent=0 // loop_header_branch
    %12 = sbr.rel (%p10) target = $region8
  $region5: #{tpu_custom_call.1} parent=0 // loop_body
    %s14 = ssub.s32 %s9, 1
    %s15 = ssub.s32 %s9, 2
    %s22 = sadd.s32 1, %s17
    %p23 = scmp.ge.s32.totalorder %s22, 1
    %s24 = scalar_select %p23, 0, %s22
    %s25 = sadd.s32 1, %s16
    %s26 = scalar_select %p23, %s25, %s16
    %p27 = scmp.ge.s32.totalorder %s26, 2
    %s28 = scalar_select %p27, 0, %s26
    %s29 = ssub.s32 %s16, %s28
    %p30 = scmp.eq.s32.totalorder %s29, 0
    %s32 = sadd.s32 %s31, 1
    %s33 = scalar_select %p30, %s31, %s32
    %p36 = pneg %p30
    %p37 = scmp.eq.s32.totalorder %s9, 1
    %p38 = por %p36, %p37
    %p39 = scmp.ne.s32.totalorder %s31, %s34
    %p40 = scmp.eq.s32.totalorder %s9, 0
    %p41 = por %p39, %p40
    %p42 = scmp.ne.s32.totalorder %s31, %s34
    %p43 = scmp.eq.s32.totalorder %s14, 1
    %p44 = por %p42, %p43
    %p45 = scmp.ne.s32.totalorder %s34, %s35
    %p46 = scmp.eq.s32.totalorder %s14, 0
    %p47 = por %p45, %p46
    %p48 = scmp.ne.s32.totalorder %s34, %s35
    %p49 = scmp.eq.s32.totalorder %s15, 1
    %p50 = por %p48, %p49
    %p52 = scmp.ne.s32.totalorder %s35, %s51
    %p53 = scmp.eq.s32.totalorder %s15, 0
    %p54 = por %p52, %p53
    %s55 = ssub.s32 %s17, %s24
    %p56 = scmp.eq.s32.totalorder %s55, 0
    %s58 = sadd.s32 %s57, 1
    %s59 = scalar_select %p56, %s57, %s58
    %p62 = pneg %p56
    %p63 = scmp.eq.s32.totalorder %s9, 1
    %p64 = por %p62, %p63
    %p65 = scmp.ne.s32.totalorder %s57, %s60
    %p66 = scmp.eq.s32.totalorder %s9, 0
    %p67 = por %p65, %p66
    %p68 = scmp.ne.s32.totalorder %s57, %s60
    %p69 = scmp.eq.s32.totalorder %s14, 1
    %p70 = por %p68, %p69
    %p71 = scmp.ne.s32.totalorder %s60, %s61
    %p72 = scmp.eq.s32.totalorder %s14, 0
    %p73 = por %p71, %p72
    %p74 = scmp.ne.s32.totalorder %s60, %s61
    %p75 = scmp.eq.s32.totalorder %s15, 1
    %p76 = por %p74, %p75
    %p78 = scmp.ne.s32.totalorder %s61, %s77
    %p79 = scmp.eq.s32.totalorder %s15, 0
    %p80 = por %p78, %p79
    %s81 = ssub.s32 %s17, %s24
    %p82 = scmp.eq.s32.totalorder %s81, 0
    %s84 = sadd.s32 %s83, 1
    %s85 = scalar_select %p82, %s83, %s84
    %p88 = pneg %p82
    %p89 = scmp.eq.s32.totalorder %s9, 1
    %p90 = por %p88, %p89
    %p91 = scmp.ne.s32.totalorder %s83, %s86
    %p92 = scmp.eq.s32.totalorder %s9, 0
    %p93 = por %p91, %p92
    %p94 = scmp.ne.s32.totalorder %s83, %s86
    %p95 = scmp.eq.s32.totalorder %s14, 1
    %p96 = por %p94, %p95
    %p97 = scmp.ne.s32.totalorder %s86, %s87
    %p98 = scmp.eq.s32.totalorder %s14, 0
    %p99 = por %p97, %p98
    %p100 = scmp.ne.s32.totalorder %s86, %s87
    %p101 = scmp.eq.s32.totalorder %s15, 1
    %p102 = por %p100, %p101
    %p104 = scmp.ne.s32.totalorder %s87, %s103
    %p105 = scmp.eq.s32.totalorder %s15, 0
    %p106 = por %p104, %p105
    %s107 = ssub.s32 %s16, %s28
    %s108 = ssub.s32 %s17, %s24
    %s109 = sor.u32 %s107, %s108
    %p110 = scmp.eq.s32.totalorder %s109, 0
    %s112 = sadd.s32 %s111, 1
    %s113 = scalar_select %p110, %s111, %s112
    %p116 = pneg %p110
    %p117 = scmp.eq.s32.totalorder %s9, 1
    %p118 = por %p116, %p117
    %p119 = scmp.ne.s32.totalorder %s111, %s114
    %p120 = scmp.eq.s32.totalorder %s9, 0
    %p121 = por %p119, %p120
    %p122 = scmp.ne.s32.totalorder %s111, %s114
    %p123 = scmp.eq.s32.totalorder %s14, 1
    %p124 = por %p122, %p123
    %p125 = scmp.ne.s32.totalorder %s114, %s115
    %p126 = scmp.eq.s32.totalorder %s14, 0
    %p127 = por %p125, %p126
    %p128 = scmp.ne.s32.totalorder %s114, %s115
    %p129 = scmp.eq.s32.totalorder %s15, 1
    %p130 = por %p128, %p129
    %p132 = scmp.ne.s32.totalorder %s115, %s131
    %p133 = scmp.eq.s32.totalorder %s15, 0
    %p134 = por %p132, %p133
    %p135 = scmp.le.s32.totalorder 1, %s9
    %p136 = scmp.lt.s32.totalorder %s9, 3
    %p137 = pnand %p135, %p136
    %p138 = pneg %p137
    // Predicated region
    $region9: #{tpu_custom_call.1} parent=5 // pred_check
      _
    $region10: #{tpu_custom_call.1} parent=5 // pred_check_branch
      %140 = sbr.rel (%p137) target = $region12
    $region11: #{tpu_custom_call.1} parent=5 // pred_region
      %s141 = ssub.s32 %s9, 1
      // Predicated region
      $region13: #{tpu_custom_call.1} parent=11 // pred_check
        %p142 = pneg %p73
      $region14: #{tpu_custom_call.1} parent=11 // pred_check_branch
        %144 = sbr.rel (%p142) target = $region16
      $region15: #{tpu_custom_call.1} parent=11 // pred_region
        %s145 = smul.u32 2, %s19
        %p146 = scmp.lt.s32.totalorder %s145, 1
        %s147 = scalar_select %p146, %s145, 1
        %s148 = smul.addr %s147, 4
        %s149 = scalar_lea.vmem %s1, %s148
        %s150 = smul.u32 2, %s19
      $region16: #{tpu_custom_call.1} parent=11 // pred_fallthru
        _
      // Predicated region
      $region17: #{tpu_custom_call.1} parent=11 // pred_check
        %p151 = pneg %p99
      $region18: #{tpu_custom_call.1} parent=11 // pred_check_branch
        %153 = sbr.rel (%p151) target = $region20
      $region19: #{tpu_custom_call.1} parent=11 // pred_region
        %s154 = smul.u32 2, %s19
        %p155 = scmp.lt.s32.totalorder %s154, 1
        %s156 = scalar_select %p155, %s154, 1
        %s157 = smul.addr %s156, 8
        %s158 = scalar_lea.vmem %s2, %s157
        %s159 = smul.u32 2, %s19
      $region20: #{tpu_custom_call.1} parent=11 // pred_fallthru
        _
    $region12: #{tpu_custom_call.1} parent=5 // pred_fallthru
      _
    %p160 = scmp.lt.s32.totalorder %s9, 2
    // Predicated region
    $region21: #{tpu_custom_call.1} parent=5 // pred_check
      %p161 = pneg %p160
    $region22: #{tpu_custom_call.1} parent=5 // pred_check_branch
      %163 = sbr.rel (%p161) target = $region24
    $region23: #{tpu_custom_call.1} parent=5 // pred_region
      // Predicated region
      $region25: #{tpu_custom_call.1} parent=23 // pred_check
        %p164 = pneg %p41
      $region26: #{tpu_custom_call.1} parent=23 // pred_check_branch
        %166 = sbr.rel (%p164) target = $region28
      $region27: #{tpu_custom_call.1} parent=23 // pred_region
        %p167 = scmp.lt.s32.totalorder %s16, 1
        %s168 = scalar_select %p167, %s16, 1
        %s169 = smul.addr %s168, 4
        %s170 = smul.addr %s169, 8
        %s171 = scalar_lea.vmem %s0, %s170
      $region28: #{tpu_custom_call.1} parent=23 // pred_fallthru
        _
    $region24: #{tpu_custom_call.1} parent=5 // pred_fallthru
      _
    %p172 = scmp.le.s32.totalorder 1, %s9
    %p173 = scmp.lt.s32.totalorder %s9, 3
    %p174 = pnand %p172, %p173
    %p175 = pneg %p174
    // Predicated region
    $region29: #{tpu_custom_call.1} parent=5 // pred_check
      _
    $region30: #{tpu_custom_call.1} parent=5 // pred_check_branch
      %177 = sbr.rel (%p174) target = $region32
    $region31: #{tpu_custom_call.1} parent=5 // pred_region
      %s178 = ssub.s32 %s9, 1
      %p179 = scmp.lt.s32.totalorder %s18, 1
      %s180 = scalar_select %p179, %s18, 1
      %s181 = smul.addr %s180, 4
      %s182 = smul.addr %s181, 8
      %s183 = scalar_lea.vmem %s0, %s182
      %p184 = pneg %p47
      %p185 = pneg %p44
      %s186 = smul.u32 2, %s19
      %p187 = scmp.lt.s32.totalorder %s186, 1
      %s188 = scalar_select %p187, %s186, 1
      %s189 = smul.addr %s188, 4
      %s190 = scalar_lea.vmem %s1, %s189
      %p191 = pneg %p73
      %p192 = pneg %p70
      %s193 = smul.u32 2, %s19
      %p194 = scmp.lt.s32.totalorder %s193, 1
      %s195 = scalar_select %p194, %s193, 1
      %s196 = smul.addr %s195, 8
      %s197 = scalar_lea.vmem %s2, %s196
      %p198 = pneg %p99
      %p199 = pneg %p96
      %p200 = pneg %p127
      %p201 = pneg %p124
      %s202 = smul.u32 2, %s19
      %p203 = scmp.lt.s32.totalorder %s18, 1
      %s204 = scalar_select %p203, %s18, 1
      %p205 = scmp.lt.s32.totalorder %s202, 1
      %s206 = scalar_select %p205, %s202, 1
      %s207 = smul.addr %s204, 2
      %s208 = sadd.s32 %s206, %s207
      %s209 = smul.addr %s208, 4
      %s210 = scalar_lea.vmem %s3, %s209
      %p211 = scmp.lt.s32.totalorder %s18, 1
      %s212 = scalar_select %p211, %s18, 1
      %s213 = smul.addr %s212, 4
      %s214 = smul.addr %s213, 8
      %s215 = scalar_lea.vmem %s0, %s214
      %s216 = smul.u32 2, %s19
      %p217 = scmp.lt.s32.totalorder %s216, 1
      %s218 = scalar_select %p217, %s216, 1
      %s219 = smul.addr %s218, 4
      %s220 = scalar_lea.vmem %s1, %s219
      %s221 = smul.u32 2, %s19
      %s222 = smul.u32 2, %s19
      %p223 = scmp.lt.s32.totalorder %s222, 1
      %s224 = scalar_select %p223, %s222, 1
      %s225 = smul.addr %s224, 8
      %s226 = scalar_lea.vmem %s2, %s225
      %s227 = smul.u32 2, %s19
      %s228 = smul.u32 2, %s19
      %p229 = scmp.lt.s32.totalorder %s18, 1
      %s230 = scalar_select %p229, %s18, 1
      %p231 = scmp.lt.s32.totalorder %s228, 1
      %s232 = scalar_select %p231, %s228, 1
      %s233 = smul.addr %s230, 2
      %s234 = sadd.s32 %s232, %s233
      %s235 = smul.addr %s234, 4
      %s236 = scalar_lea.vmem %s3, %s235
      %s237 = smul.u32 2, %s19
      %v239 = vld [vmem:[%s215] sm:$0xff]
      %v240 = vld [vmem:[%s215 + $0x8] sm:$0xff]
      %v241 = vld [vmem:[%s215 + $0x10] sm:$0xff]
      %v242 = vld [vmem:[%s215 + $0x18] sm:$0xff]
      %v243 = vpack.c.bf16 %v240, %v239
      %v244 = vpack.c.bf16 %v242, %v241
      %v245 = vld [vmem:[%s220] sm:$0xf]
      %v246 = vld [vmem:[%s220 + $0x4] sm:$0xf]
      %v247 = vld [vmem:[%s226] sm:$0xff]
      %v248 = vld [vmem:[%s226 + $0x8] sm:$0xff]
      %250 = vset.pattern.permute.xlu0 0
      %251 = vperm.xlu0 %250, %v247
      %v252 = vpop.permute.xlu0 %251
      %255 = vset.pattern.permute.xlu0 0
      %256 = vperm.xlu0 %255, %v248
      %v257 = vpop.permute.xlu0 %256
      %v261 = vunpack.c.l.b16 %v245
      %v262 = vunpack.c.l.b16 %v246
      %v263 = vpack.c.b16 %v262, %v261
      %vm264 = vcmask 261120
      %v266 = vsel %vm264, %v263, 0
      %268 = vmatprep.subr.bf16.mxu0 0
      %269 = vmatpush1.bf16.msra.mxu0 0
      %270 = vmatprep.subr.bf16.mxu0 0
      %271 = vmatpush1.bf16.msra.mxu0 0
      %272 = vmatprep.subr.bf16.mxu0 0
      %273 = vmatpush1.bf16.msra.mxu0 0
      %274 = vmatprep.subr.bf16.mxu0 0
      %275 = vmatpush1.bf16.msra.mxu0 0
      %276 = vmatprep.subr.bf16.mxu0 0
      %277 = vmatpush1.bf16.msra.mxu0 0
      %278 = vmatprep.subr.bf16.mxu0 0
      %279 = vmatpush1.bf16.msra.mxu0 0
      %280 = vmatprep.subr.bf16.mxu0 0
      %281 = vmatpush1.bf16.msra.mxu0 %v244
      %282 = vmatprep.subr.bf16.mxu0 0
      %283 = vmatpush1.bf16.msra.mxu0 %v243
      %284 = vmatprep.subr.bf16.mxu0 0
      %285 = vmatpush2.bf16.msra.mxu0 0
      %286 = vmatprep.subr.bf16.mxu0 0
      %287 = vmatpush2.bf16.msra.mxu0 0
      %288 = vmatprep.subr.bf16.mxu0 0
      %289 = vmatpush2.bf16.msra.mxu0 0
      %290 = vmatprep.subr.bf16.mxu0 0
      %291 = vmatpush2.bf16.msra.mxu0 0
      %292 = vmatprep.subr.bf16.mxu0 0
      %293 = vmatpush2.bf16.msra.mxu0 0
      %294 = vmatprep.subr.bf16.mxu0 0
      %295 = vmatpush2.bf16.msra.mxu0 0
      %296 = vmatprep.subr.bf16.mxu0 0
      %297 = vmatpush2.bf16.msra.mxu0 0
      %298 = vmatprep.subr.bf16.mxu0 0
      %299 = vmatpush2.bf16.msra.mxu0 0
      %300 = vmatprep.mubr.bf16.mxu0 0
      %301 = vmatmul.mubr.bf16.gmra.mxu0 %v266
      %v302 = vpop.f32.mrf.mxu0
      %v303 = vadd.f32 %v252, %v302
      %v304 = vpop.f32.mrf.mxu0
      %v305 = vpop.f32.mrf.mxu0
      %v306 = vadd.f32 %v257, %v305
      %v307 = vpop.f32.mrf.mxu0
      %308 = vdwg.mxu0
      %v309 = vpack.c.bf16 %v306, %v303
      %v311 = vunpack.c.l.b16 %v309
      %v312 = vunpack.c.h.b16 %v309
      %v313 = vpack.c.b16 %v311, %v311
      %v314 = vpack.c.b16 %v312, %v312
      %vm317 = vcmask 27648
      %318 = vst.msk [vmem:[%s236] sm:$0xf] %vm317, %v313
      %319 = vst.msk [vmem:[%s236 + $0x4] sm:$0xf] %vm317, %v314
      %s320 = smul.u32 2, %s19
      %p321 = scmp.lt.s32.totalorder %s18, 1
      %s322 = scalar_select %p321, %s18, 1
      %p323 = scmp.lt.s32.totalorder %s320, 1
      %s324 = scalar_select %p323, %s320, 1
      %s325 = smul.addr %s322, 2
      %s326 = sadd.s32 %s324, %s325
      %s327 = smul.addr %s326, 4
      %s328 = scalar_lea.vmem %s3, %s327
      // Predicated region
      $region33: #{tpu_custom_call.1} parent=31 // pred_check
        %p329 = pneg %p124
      $region34: #{tpu_custom_call.1} parent=31 // pred_check_branch
        %331 = sbr.rel (%p329) target = $region36
      $region35: #{tpu_custom_call.1} parent=31 // pred_region
        %s332 = smul.u32 2, %s19
      $region36: #{tpu_custom_call.1} parent=31 // pred_fallthru
        _
    $region32: #{tpu_custom_call.1} parent=5 // pred_fallthru
      _
    %p333 = scmp.le.s32.totalorder 2, %s9
    // Predicated region
    $region37: #{tpu_custom_call.1} parent=5 // pred_check
      %p334 = pneg %p333
    $region38: #{tpu_custom_call.1} parent=5 // pred_check_branch
      %336 = sbr.rel (%p334) target = $region40
    $region39: #{tpu_custom_call.1} parent=5 // pred_region
      %s337 = ssub.s32 %s9, 2
      // Predicated region
      $region41: #{tpu_custom_call.1} parent=39 // pred_check
        %p338 = pneg %p130
      $region42: #{tpu_custom_call.1} parent=39 // pred_check_branch
        %340 = sbr.rel (%p338) target = $region44
      $region43: #{tpu_custom_call.1} parent=39 // pred_region
        %s341 = smul.u32 2, %s21
        %p342 = scmp.lt.s32.totalorder %s20, 1
        %s343 = scalar_select %p342, %s20, 1
        %p344 = scmp.lt.s32.totalorder %s341, 1
        %s345 = scalar_select %p344, %s341, 1
        %s346 = smul.addr %s343, 2
        %s347 = sadd.s32 %s345, %s346
        %s348 = smul.addr %s347, 4
        %s349 = scalar_lea.vmem %s3, %s348
      $region44: #{tpu_custom_call.1} parent=39 // pred_fallthru
        _
    $region40: #{tpu_custom_call.1} parent=5 // pred_fallthru
      _
  $region6: #{tpu_custom_call.1} parent=0 // loop_footer
    %s13 = sadd.s32 1, %s9
  $region7: #{tpu_custom_call.1} parent=0 // loop_footer_branch
    %8 = sbr.rel target = $region3
  $region8: #{tpu_custom_call.1} parent=0 // loop_exit
    _

</llo_original>
